<compile_context>
chip_gen: v7x
topology: tpu7x:2x2x1
jax: 0.10.0
libtpu: 0.0.40
codegen_flags: <defaults>
</compile_context>

<pallas_src>
import jax
import jax.numpy as jnp
from jax import lax
from jax.experimental import pallas as pl
from jax.experimental.pallas import tpu as pltpu

_MiB = 1024 * 1024
_SUPPORTED_ACTIVATIONS = (None, "relu", "tanh")
# TODO(synk): other LinearNorm activations (gelu, sigmoid, ...) not wired here.


# --------------------------------------------------------------------------------------
# Helpers
# --------------------------------------------------------------------------------------
def _apply_activation(x, activation):
    if activation == "relu":
        return jnp.maximum(x, 0.0)
    if activation == "tanh":
        return jnp.tanh(x)
    return x  # None -> identity (validated in wrapper)


def _sublane_multiple(dtype):
    # f32 -> 8, bf16/f16 -> 16, int8/fp8 -> 32
    return max(8, 32 // jnp.dtype(dtype).itemsize)


def _vmem_budget_and_limit():
    """Generation-aware (per input buffer budget, vmem_limit_bytes)."""
    kind = ""
    try:
        kind = jax.devices()[0].device_kind.lower()
    except Exception:
        pass
    vmem_cap = None
    try:
        vmem_cap = int(pltpu.get_tpu_info().vmem_capacity_bytes)
    except Exception:
        pass

    if (vmem_cap is not None and vmem_cap <= 64 * _MiB) or ("v7" in kind):
        per_buf, limit = 14 * _MiB, 48 * _MiB          # v7x: only 64 MiB physical VMEM
    elif "v6" in kind:
        per_buf, limit = 16 * _MiB, 80 * _MiB          # v6e: 128 MiB physical VMEM
    elif "v5" in kind:
        per_buf, limit = 6 * _MiB, 32 * _MiB           # v5e: slower HBM, modest tiles
    else:
        per_buf, limit = 8 * _MiB, 48 * _MiB           # unknown generation: conservative
    if vmem_cap is not None:
        limit = min(limit, (vmem_cap * 3) // 4)
        per_buf = min(per_buf, limit // 3)             # 2x double-buffer + headroom
    return per_buf, limit


def _choose_tile_t(T, D, dtype, budget_bytes):
    """Largest sublane-aligned row count whose (tT, D) tile fits the per-buffer budget."""
    sub = _sublane_multiple(dtype)
    itemsize = jnp.dtype(dtype).itemsize
    rows = budget_bytes // max(1, D * itemsize)
    rows = max(sub, (rows // sub) * sub)
    return T if rows >= T else rows


def _choose_tile_b(B, T, D, dtype, budget_bytes):
    """Batch rows per tile for the batch-fused path (0 => don't fuse)."""
    itemsize = jnp.dtype(dtype).itemsize
    per_row = T * D * itemsize
    rows = budget_bytes // max(1, per_row)
    if rows >= B:
        return B
    if rows >= 8:
        return (rows // 8) * 8   # keep out-block second-to-last dim a multiple of 8
    return 0


# --------------------------------------------------------------------------------------
# Kernels
# --------------------------------------------------------------------------------------
def _make_seq_kernel(activation, tile_t, n_t_split):
    """Sequence-tiled kernel: grid (B, n_split, n_t_split), resident f32 accumulator."""

    def kernel(len_ref, x_ref, w_ref, b_ref, out_ref):
        # len_ref: SMEM (B,) int32     (scalar-prefetched lengths)
        # x_ref:   VMEM (1, tT, D)     (one T-tile of one batch row, native dtype)
        # w_ref:   VMEM (1, D)         (Linear weight, out_dim == 1, native dtype)
        # b_ref:   VMEM (1, 1) f32     (Linear bias)
        # out_ref: VMEM (1, 1, 1, 1) f32  (resident accumulator / per-(b, split) result)
        b = pl.program_id(0)
        c = pl.program_id(1)
        t = pl.program_id(2)

        @pl.when(t == 0)
        def _():
            out_ref[...] = jnp.zeros_like(out_ref)

        x = x_ref[0]                                   # (tT, D) native dtype
        w = w_ref[...]                                 # (1, D)

        # Linear(D -> 1) on the MXU, lane-dense orientation: (1, D) . (tT, D)^T -> (1, tT)
        proj = lax.dot_general(
            w, x,
            dimension_numbers=(((1,), (1,)), ((), ())),
            preferred_element_type=jnp.float32,
        )                                              # (1, tT) f32
        proj = _apply_activation(proj + b_ref[...], activation)

        # Mask from the *intended* (unclamped) global tile start.  Clamped duplicate
        # tiles (split path, odd tile count) and the padded tail of a partial last tile
        # both land at start >= T >= length, so they contribute exactly zero.
        start = (c * n_t_split + t) * tile_t
        t_idx = lax.broadcasted_iota(jnp.int32, proj.shape, 1) + start
        mask = t_idx < len_ref[b]

        # Select (not multiply) so exp(garbage/padded) never produces inf * 0 = NaN.
        contrib = jnp.where(mask, jnp.exp(proj), 0.0)
        out_ref[...] += jnp.sum(contrib).reshape(1, 1, 1, 1)

    return kernel


def _make_batch_kernel(activation, tile_b, B):
    """Batch-fused kernel: grid (ceil(B/tB),), block (tB, T, D), per-row results."""

    def kernel(len_ref, x_ref, w_ref, b_ref, out_ref):
        # len_ref: SMEM (B,) int32
        # x_ref:   VMEM (tB, T, D) native dtype
        # w_ref:   VMEM (1, D);  b_ref: VMEM (1, 1) f32
        # out_ref: VMEM (tB, 1) f32
        b0 = pl.program_id(0) * tile_b
        w = w_ref[...]
        bias = b_ref[...]

        @pl.loop(0, tile_b)
        def _(r):
            row = b0 + r
            x_r = x_ref[r]                             # (T, D)
            proj = lax.dot_general(
                w, x_r,
                dimension_numbers=(((1,), (1,)), ((), ())),
                preferred_element_type=jnp.float32,
            )                                          # (1, T) f32
            proj = _apply_activation(proj + bias, activation)

            # Clamp the SMEM index for padded rows of a partial batch tile and force
            # their length to 0 so no garbage exp() reaches the (discarded) output rows.
            length = jnp.where(row < B, len_ref[jnp.minimum(row, B - 1)], 0)
            t_idx = lax.broadcasted_iota(jnp.int32, proj.shape, 1)
            mask = t_idx < length

            contrib = jnp.where(mask, jnp.exp(proj), 0.0)
            out_ref[pl.ds(r, 1), :] = jnp.sum(contrib).reshape(1, 1)

    return kernel


# --------------------------------------------------------------------------------------
# Wrapper
# --------------------------------------------------------------------------------------
def dense_length_predictor(inputs, input_lengths, weight, bias, activation=None,
                           *, tile_t=None, batch_tile=None):
    """inputs: [B, T, D], input_lengths: [B] int, weight: [1, D], bias: [1] -> [B] f32."""
    if activation not in _SUPPORTED_ACTIVATIONS:
        raise ValueError(f"Unsupported activation for DenseLengthPredictor kernel: {activation!r}")

    B, T, D = inputs.shape
    dtype = inputs.dtype
    itemsize = jnp.dtype(dtype).itemsize
    sub = _sublane_multiple(dtype)

    lengths_i32 = input_lengths.astype(jnp.int32).reshape(B)
    # Keep inputs in their native dtype (no f32 upcast in HBM); match the weight dtype so
    # the MXU contraction sees one dtype and accumulates in f32 (bf16 weight if bf16 x).
    w2d = weight.reshape(1, D).astype(dtype)
    b2d = bias.reshape(1, 1).astype(jnp.float32)

    budget, vmem_limit = _vmem_budget_and_limit()
    per_row_bytes = T * D * itemsize

    cost = pl.CostEstimate(
        flops=2 * B * T * D,
        transcendentals=B * T,
        bytes_accessed=B * T * D * itemsize + D * itemsize + 2 * B * 4,
    )
    compiler_params_1d = pltpu.CompilerParams(
        dimension_semantics=("parallel",), vmem_limit_bytes=vmem_limit)
    compiler_params_3d = pltpu.CompilerParams(
        dimension_semantics=("parallel", "parallel", "arbitrary"),
        vmem_limit_bytes=vmem_limit)

    # ---- path selection -----------------------------------------------------------
    if batch_tile is not None:
        tb = B if batch_tile >= B else max(0, (batch_tile // 8) * 8)
    elif tile_t is not None:
        tb = 0
    else:
        tb = _choose_tile_b(B, T, D, dtype, budget) if per_row_bytes <= 4 * _MiB else 0
    use_fused = B >= 2 and tb >= 2

    if use_fused:
        # ---------------- batch-fused path (small per-row slabs, big DMAs) ----------
        out = pl.pallas_call(
            _make_batch_kernel(activation, tb, B),
            out_shape=jax.ShapeDtypeStruct((B, 1), jnp.float32),
            grid_spec=pltpu.PrefetchScalarGridSpec(
                num_scalar_prefetch=1,                      # input_lengths -> SMEM
                grid=(pl.cdiv(B, tb),),
                in_specs=[
                    pl.BlockSpec((tb, T, D), lambda i, lens: (i, 0, 0)),   # x batch-tile
                    pl.BlockSpec((1, D), lambda i, lens: (0, 0)),          # weight (shared)
                    pl.BlockSpec((1, 1), lambda i, lens: (0, 0)),          # bias   (shared)
                ],
                out_specs=pl.BlockSpec((tb, 1), lambda i, lens: (i, 0)),
            ),
            compiler_params=compiler_params_1d,
            cost_estimate=cost,
        )(lengths_i32, inputs, w2d, b2d)
        return out.reshape(B)

    # ------------------ sequence-tiled path (accumulator over T tiles) --------------
    if tile_t is None:
        tt = _choose_tile_t(T, D, dtype, budget)
    else:
        tt = T if tile_t >= T else max(sub, (tile_t // sub) * sub)
    n_t = pl.cdiv(T, tt)
    # Low-batch split of the T axis across two grid slots: lets both v7x TensorCores
    # work when B == 1; harmless (one clamped+masked duplicate tile at most) elsewhere.
    n_split = 2 if (B < 2 and n_t >= 2) else 1
    n_t_split = pl.cdiv(n_t, n_split)

    if n_split == 1:
        x_map = lambda b, c, t, lens: (b, t, 0)
    else:
        x_map = lambda b, c, t, lens: (b, jnp.minimum(c * n_t_split + t, n_t - 1), 0)

    out = pl.pallas_call(
        _make_seq_kernel(activation, tt, n_t_split),
        out_shape=jax.ShapeDtypeStruct((B, n_split, 1, 1), jnp.float32),
        grid_spec=pltpu.PrefetchScalarGridSpec(
            num_scalar_prefetch=1,                          # input_lengths -> SMEM
            grid=(B, n_split, n_t_split),
            in_specs=[
                pl.BlockSpec((1, tt, D), x_map),                         # x T-tile
                pl.BlockSpec((1, D), lambda b, c, t, lens: (0, 0)),      # weight (shared)
                pl.BlockSpec((1, 1), lambda b, c, t, lens: (0, 0)),      # bias   (shared)
            ],
            # Output block constant across t -> resident accumulator, one writeback per (b, c).
            out_specs=pl.BlockSpec((1, 1, 1, 1), lambda b, c, t, lens: (b, c, 0, 0)),
        ),
        compiler_params=compiler_params_3d,
        cost_estimate=cost,
    )(lengths_i32, inputs, w2d, b2d)
    return out.reshape(B, n_split).sum(axis=-1)


# --------------------------------------------------------------------------------------
# Reference + self-test
# --------------------------------------------------------------------------------------
def _reference(inputs, input_lengths, weight, bias, activation=None):
    x = inputs.astype(jnp.float32)
    proj = x @ weight.reshape(-1, 1).astype(jnp.float32) + bias.reshape(1, 1)   # (B, T, 1)
    if activation == "relu":
        proj = jnp.maximum(proj, 0.0)
    elif activation == "tanh":
        proj = jnp.tanh(proj)
    T = inputs.shape[1]
    mask = (jnp.arange(T)[None, :] < input_lengths[:, None]).astype(jnp.float32)
    return jnp.sum(jnp.exp(proj[..., 0]) * mask, axis=-1)


if __name__ == "__main__":
    key = jax.random.PRNGKey(0)
    k_w, k_x = jax.random.split(key, 2)

    B, T, D = 2, 8, 32   # batch=2, seq=8, embd_dim=32
    limit = (6.0 / (D + 1)) ** 0.5
    weight = jax.random.uniform(k_w, (1, D), jnp.float32, -limit, limit)
    bias = jnp.zeros((1,), jnp.float32)
    inputs = jax.random.normal(k_x, (B, T, D), jnp.float32)
    input_lengths = jnp.array([5, 8], jnp.int32)

    def check(got, want, name):
        assert got.shape == want.shape, (name, got.shape, want.shape)
        assert jnp.allclose(got, want, rtol=1e-5, atol=1e-5), (name, got, want)

    # 1) auto path (batch-fused at this tiny shape), identity activation.
    got = jax.block_until_ready(dense_length_predictor(inputs, input_lengths, weight, bias))
    check(got, _reference(inputs, input_lengths, weight, bias), "auto/fused")

    # 2) relu branch.
    got = jax.block_until_ready(
        dense_length_predictor(inputs, input_lengths, weight, bias, activation="relu"))
    check(got, _reference(inputs, input_lengths, weight, bias, "relu"), "relu")

    # 3) force the sequence-tiled accumulator path (multiple + partial T tiles).
    T2 = 40
    inputs2 = jax.random.normal(jax.random.PRNGKey(1), (B, T2, D), jnp.float32)
    lengths2 = jnp.array([23, 40], jnp.int32)
    got = jax.block_until_ready(
        dense_length_predictor(inputs2, lengths2, weight, bias, tile_t=16))
    check(got, _reference(inputs2, lengths2, weight, bias), "seq-tiled")

    # 4) B=1: sequence path with 2-way split of the T tiles (v7x dual-core case),
    #    including the clamped/masked duplicate tile (odd tile count).
    inputs3 = inputs2[:1]
    lengths3 = jnp.array([29], jnp.int32)
    got = jax.block_until_ready(
        dense_length_predictor(inputs3, lengths3, weight, bias, tile_t=16))
    check(got, _reference(inputs3, lengths3, weight, bias), "seq-split-B1")

    print("KERNEL_OK")
</pallas_src>

<mosaic_0001>
module attributes {stable_mosaic.version = 11 : i64} {
  func.func @kernel(%arg0: i32, %arg1: memref<2xi32, #tpu.memory_space<smem>>, %arg2: memref<2x8x32xf32, #tpu.memory_space<vmem>>, %arg3: memref<1x32xf32, #tpu.memory_space<vmem>>, %arg4: memref<1x1xf32, #tpu.memory_space<vmem>>, %arg5: memref<2x1xf32, #tpu.memory_space<vmem>>) attributes {dimension_semantics = [#tpu.dimension_semantics<parallel>], iteration_bounds = array<i64: 1>, scalar_prefetch = 1 : i64, scratch_operands = 0 : i64, tpu.core_type = #tpu.core_type<tc>, window_params = [{transform_indices = @transform_0, window_bounds = array<i64: 2, 8, 32>}, {pipeline_mode = #tpu.pipeline_mode<synchronous>, transform_indices = @transform_1, window_bounds = array<i64: 1, 32>}, {pipeline_mode = #tpu.pipeline_mode<synchronous>, transform_indices = @transform_2, window_bounds = array<i64: 1, 1>}, {transform_indices = @transform_3, window_bounds = array<i64: 2, 1>}]} {
    %c2_i32 = arith.constant 2 : i32
    %0 = arith.muli %arg0, %c2_i32 : i32
    %c0 = arith.constant 0 : index
    %c0_0 = arith.constant 0 : index
    %1 = vector.load %arg3[%c0, %c0_0] : memref<1x32xf32, #tpu.memory_space<vmem>>, vector<1x32xf32>
    %c0_1 = arith.constant 0 : index
    %c0_2 = arith.constant 0 : index
    %2 = vector.load %arg4[%c0_1, %c0_2] : memref<1x1xf32, #tpu.memory_space<vmem>>, vector<1x1xf32>
    %c0_i32 = arith.constant 0 : i32
    %c2_i32_3 = arith.constant 2 : i32
    %3 = arith.addi %c0_i32, %c2_i32_3 : i32
    %c1_i32 = arith.constant 1 : i32
    scf.for %arg6 = %c0_i32 to %3 step %c1_i32  : i32 {
      %c1_i32_5 = arith.constant 1 : i32
      %4 = arith.muli %arg6, %c1_i32_5 : i32
      %c0_i32_6 = arith.constant 0 : i32
      %5 = arith.addi %c0_i32_6, %4 : i32
      %6 = arith.addi %0, %5 : i32
      %7 = arith.index_cast %5 : i32 to index
      %c0_7 = arith.constant 0 : index
      %c0_8 = arith.constant 0 : index
      %8 = vector.load %arg2[%7, %c0_7, %c0_8] : memref<2x8x32xf32, #tpu.memory_space<vmem>>, vector<1x8x32xf32>
      %9 = vector.shape_cast %8 : vector<1x8x32xf32> to vector<8x32xf32>
      %cst = arith.constant dense<0.000000e+00> : vector<1x8xf32>
      %10 = tpu.matmul %1, %9, %cst {dimension_numbers = #tpu.dot_dimension_numbers<[1], [1], [0], [0], [0, 0, 1, 0], [], []>} : vector<1x32xf32>, vector<8x32xf32>, vector<1x8xf32> -> vector<1x8xf32>
      %11 = vector.broadcast %2 : vector<1x1xf32> to vector<1x8xf32>
      %12 = arith.addf %10, %11 : vector<1x8xf32>
      %c2_i32_9 = arith.constant 2 : i32
      %13 = arith.cmpi slt, %6, %c2_i32_9 : i32
      %c1_i32_10 = arith.constant 1 : i32
      %14 = arith.minsi %6, %c1_i32_10 : i32
      %15 = arith.index_cast %14 : i32 to index
      %16 = memref.load %arg1[%15] : memref<2xi32, #tpu.memory_space<smem>>
      %c0_i32_11 = arith.constant 0 : i32
      %17 = arith.select %13, %16, %c0_i32_11 : i32
      %18 = tpu.iota {dimensions = array<i32: 1>} : vector<1x8xi32>
      %19 = vector.broadcast %17 : i32 to vector<1x8xi32>
      %20 = arith.cmpi slt, %18, %19 : vector<1x8xi32>
      %21 = math.exp %12 : vector<1x8xf32>
      %cst_12 = arith.constant 0.000000e+00 : f32
      %22 = vector.broadcast %cst_12 : f32 to vector<1x8xf32>
      %23 = arith.select %20, %21, %22 : vector<1x8xi1>, vector<1x8xf32>
      %24 = vector.shape_cast %23 : vector<1x8xf32> to vector<1x1x8xf32>
      %cst_13 = arith.constant dense<0.000000e+00> : vector<1xf32>
      %25 = vector.multi_reduction <add>, %24, %cst_13 [1, 2] : vector<1x1x8xf32> to vector<1xf32>
      %26 = vector.shape_cast %25 : vector<1xf32> to vector<1x1x1xf32>
      %27 = vector.extract %26[0, 0, 0] : f32 from vector<1x1x1xf32>
      %28 = vector.broadcast %27 : f32 to vector<1x1xf32>
      %29 = arith.index_cast %5 : i32 to index
      %c0_14 = arith.constant 0 : index
      %30 = vector.load %arg5[%29, %c0_14] : memref<2x1xf32, #tpu.memory_space<vmem>>, vector<1x1xf32>
      tpu.vector_store %arg5[%29, %c0_14], %28 {strides = array<i32>} : memref<2x1xf32, #tpu.memory_space<vmem>>, vector<1x1xf32>,
    }
    %c2_i32_4 = arith.constant 2 : i32
    return
  }
  func.func @transform_0(%arg0: i32, %arg1: memref<2xi32, #tpu.memory_space<smem>>) -> (i32, i32, i32) {
    %c0_i32 = arith.constant 0 : i32
    %c0_i32_0 = arith.constant 0 : i32
    %c0_i32_1 = arith.constant 0 : i32
    return %arg0, %c0_i32, %c0_i32_0 : i32, i32, i32
  }
  func.func @transform_1(%arg0: i32, %arg1: memref<2xi32, #tpu.memory_space<smem>>) -> (i32, i32) {
    %c0_i32 = arith.constant 0 : i32
    %c0_i32_0 = arith.constant 0 : i32
    %c0_i32_1 = arith.constant 0 : i32
    return %c0_i32, %c0_i32_0 : i32, i32
  }
  func.func @transform_2(%arg0: i32, %arg1: memref<2xi32, #tpu.memory_space<smem>>) -> (i32, i32) {
    %c0_i32 = arith.constant 0 : i32
    %c0_i32_0 = arith.constant 0 : i32
    %c0_i32_1 = arith.constant 0 : i32
    return %c0_i32, %c0_i32_0 : i32, i32
  }
  func.func @transform_3(%arg0: i32, %arg1: memref<2xi32, #tpu.memory_space<smem>>) -> (i32, i32) {
    %c0_i32 = arith.constant 0 : i32
    %c0_i32_0 = arith.constant 0 : i32
    return %arg0, %c0_i32 : i32, i32
  }
}

</mosaic_0001>

<llo_original>
// kernel: tpu_custom_call.1
$region0: #{tpu_custom_call.1}
  #allocation0 [shape = 'u32[]', space=smem, size = 0x4, offset = 0x4, fixed_abs, tag = 'smem constant byte address 0x4 - core index']
  #allocation1 [shape = 'u32[144,128]{1,0:T(1,128)}', space=vmem, size = 0x12000, scoped, tag = 'internal scratch']
  #allocation2 [shape = 's32[1]{0}', space=sflag, size = 0x4, scoped, tag = 'scoped memory for tpu_custom_call.1']
  #allocation3 [shape = 'u8[512]{0}', space=smem, size = 0x200, scoped, tag = 'prefetched SMEM operand 0']
  #allocation4 [shape = 'f32[1,1]{1,0:T(1,128)S(1)}', space=vmem, size = 0x200, scoped, tag = 'scoped memory for tpu_custom_call.1']
  %s0 = inlined_call_operand.vmem [shape: s32[2], index: 0, kind: input, shape index: {}]
  %s1 = inlined_call_operand.hbm [shape: f32[2,8,32], index: 1, kind: input, shape index: {}]
  %s2 = inlined_call_operand.vmem [shape: f32[1,32], index: 2, kind: input, shape index: {}]
  %s3 = inlined_call_operand.<no memory space> [shape: f32[1,1], index: 3, kind: input, shape index: {}]
  %s4 = inlined_call_operand.vmem [shape: f32[2,1], index: 4, kind: output, shape index: {}]
  %s5 = sld [smem:[#allocation0]]
  $region33: #{tpu_custom_call.1} parent=0
    _
  %s7 = ssub.s32 1, %s5
  %s8 = scalar_select 0, %s7, %s5
  %s9 = sshll.u32 %s0, 4
  %s10 = int_to_ptr.vmem [resolvable:$true] %s9
  %12 = dma.vmem_to_smem %s10, 16, [#allocation3], [#allocation2]
  %v13 = vstv %s3
  %14 = vst [vmem:[#allocation4] sm:$0x1] %v13
  %15 = dma.done [#allocation2], 16
  %16 = sfence
  $region1: #{tpu_custom_call.1} parent=0
    #allocation5 [shape = 'u8[8192]{0}', space=vmem, size = 0x2000, scoped, tag = 'input window, operand 1, single buffered']
    #allocation6 [shape = 's32[1]{0}', space=sflag, size = 0x4, scoped, tag = 'scoped memory for tpu_custom_call.1']
    %17 = vsyncpa [#allocation6], 0
    // Predicated region
    $region2: #{tpu_custom_call.1} parent=1 // pred_check
      _
    $region3: #{tpu_custom_call.1} parent=1 // pred_check_branch
      %19 = sbr.rel (0) target = $region5
    $region4: #{tpu_custom_call.1} parent=1 // pred_region
      %s21 = ssub.s32 256, 256
      %22 = vsyncadd [#allocation6], %s21
      %s23 = sshll.u32 [#allocation5], 4
      %s24 = int_to_ptr.vmem [resolvable:$true] %s23
      %29 = dma.hbm_to_vmem [thread:$0]  %s1, 256, %s24, [#allocation6], 128, 128, 8
    $region5: #{tpu_custom_call.1} parent=1 // pred_fallthru
      _
    // Predicated region
    $region6: #{tpu_custom_call.1} parent=1 // pred_check
      _
    $region7: #{tpu_custom_call.1} parent=1 // pred_check_branch
      %31 = sbr.rel (0) target = $region9
    $region8: #{tpu_custom_call.1} parent=1 // pred_region
      _
    $region9: #{tpu_custom_call.1} parent=1 // pred_fallthru
      _
    // Predicated region
    $region10: #{tpu_custom_call.1} parent=1 // pred_check
      _
    $region11: #{tpu_custom_call.1} parent=1 // pred_check_branch
      %33 = sbr.rel (0) target = $region13
    $region12: #{tpu_custom_call.1} parent=1 // pred_region
      _
    $region13: #{tpu_custom_call.1} parent=1 // pred_fallthru
      _
    // Predicated region
    $region14: #{tpu_custom_call.1} parent=1 // pred_check
      _
    $region15: #{tpu_custom_call.1} parent=1 // pred_check_branch
      %35 = sbr.rel (0) target = $region17
    $region16: #{tpu_custom_call.1} parent=1 // pred_region
      %36 = dma.done [#allocation6], 256
    $region17: #{tpu_custom_call.1} parent=1 // pred_fallthru
      _
    %s37 = smul.u32 0, 2
    %v38 = vld [vmem:[%s2] sm:$0x1]
    %v39 = vld [vmem:[#allocation4] sm:$0x1]
    loop: start=0, step=1, limit=2
    $region18: #{tpu_custom_call.1} parent=1 // loop_pre_header
      _
    $region19: #{tpu_custom_call.1} parent=1 // loop_header
      %s41 = sphi 0, %s45
      %p42 = scmp.ge.s32.totalorder %s41, 2
    $region20: #{tpu_custom_call.1} parent=1 // loop_header_branch
      %44 = sbr.rel (%p42) target = $region24
    $region21: #{tpu_custom_call.1} parent=1 // loop_body
      %s46 = sadd.s32 %s37, %s41
      %s47 = smul.u32 %s41, 8
      %s48 = scalar_lea.vmem [#allocation5], %s47
      %v49 = vld [vmem:[%s48] sm:$0xff]
      %51 = vset.pattern.permute.xlu0 0
      %52 = vperm.xlu0 %51, %v39
      %v53 = vpop.permute.xlu0 %52
      %v55 = vlaneseq
      %v56 = vshrl.u32 %v55, 7
      %v57 = vsub.s32 0, %v56
      %v58 = vrot.slane %v53, %v57
      %vm59 = vcmask 261120
      %v61 = vsel %vm59, %v38, 0
      %v64 = vsel %vm59, %v49, 0
      %66 = vmatprep.subr.mxu0 0.0
      %67 = vmatpush1.xpose.msra.mxu0 %v64
      %68 = vmatprep.subr.mxu0 0.0
      %69 = vmatpush1.xpose.msra.mxu0 0.0
      %70 = vmatprep.subr.mxu0 0.0
      %71 = vmatpush1.xpose.msra.mxu0 0.0
      %72 = vmatprep.subr.mxu0 0.0
      %73 = vmatpush1.xpose.msra.mxu0 0.0
      %74 = vmatprep.subr.mxu0 0.0
      %75 = vmatpush1.xpose.msra.mxu0 0.0
      %76 = vmatprep.subr.mxu0 0.0
      %77 = vmatpush1.xpose.msra.mxu0 0.0
      %78 = vmatprep.subr.mxu0 0.0
      %79 = vmatpush1.xpose.msra.mxu0 0.0
      %80 = vmatprep.subr.mxu0 0.0
      %81 = vmatpush1.xpose.msra.mxu0 0.0
      %82 = vmatprep.subr.mxu0 0.0
      %83 = vmatpush1.xpose.msra.mxu0 0.0
      %84 = vmatprep.subr.mxu0 0.0
      %85 = vmatpush1.xpose.msra.mxu0 0.0
      %86 = vmatprep.subr.mxu0 0.0
      %87 = vmatpush1.xpose.msra.mxu0 0.0
      %88 = vmatprep.subr.mxu0 0.0
      %89 = vmatpush1.xpose.msra.mxu0 0.0
      %90 = vmatprep.subr.mxu0 0.0
      %91 = vmatpush1.xpose.msra.mxu0 0.0
      %92 = vmatprep.subr.mxu0 0.0
      %93 = vmatpush1.xpose.msra.mxu0 0.0
      %94 = vmatprep.subr.mxu0 0.0
      %95 = vmatpush1.xpose.msra.mxu0 0.0
      %96 = vmatprep.subr.mxu0 0.0
      %97 = vmatpush1.xpose.msra.mxu0 0.0
      %98 = vmatprep.subr.mxu0 0.0
      %99 = vmatpush1.xpose.msra.mxu0 0.0
      %100 = vmatprep.subr.mxu0 0.0
      %101 = vmatpush1.xpose.msra.mxu0 0.0
      %102 = vmatprep.subr.mxu0 0.0
      %103 = vmatpush1.xpose.msra.mxu0 0.0
      %104 = vmatprep.subr.mxu0 0.0
      %105 = vmatpush1.xpose.msra.mxu0 0.0
      %106 = vmatprep.subr.mxu0 0.0
      %107 = vmatpush1.xpose.msra.mxu0 0.0
      %108 = vmatprep.subr.mxu0 0.0
      %109 = vmatpush1.xpose.msra.mxu0 0.0
      %110 = vmatprep.subr.mxu0 0.0
      %111 = vmatpush1.xpose.msra.mxu0 0.0
      %112 = vmatprep.subr.mxu0 0.0
      %113 = vmatpush1.xpose.msra.mxu0 0.0
      %114 = vmatprep.subr.mxu0 0.0
      %115 = vmatpush1.xpose.msra.mxu0 0.0
      %116 = vmatprep.subr.mxu0 0.0
      %117 = vmatpush1.xpose.msra.mxu0 0.0
      %118 = vmatprep.subr.mxu0 0.0
      %119 = vmatpush1.xpose.msra.mxu0 0.0
      %120 = vmatprep.subr.mxu0 0.0
      %121 = vmatpush1.xpose.msra.mxu0 0.0
      %122 = vmatprep.subr.mxu0 0.0
      %123 = vmatpush1.xpose.msra.mxu0 0.0
      %124 = vmatprep.subr.mxu0 0.0
      %125 = vmatpush1.xpose.msra.mxu0 0.0
      %126 = vmatprep.subr.mxu0 0.0
      %127 = vmatpush1.xpose.msra.mxu0 0.0
      %128 = vmatprep.subr.mxu0 0.0
      %129 = vmatpush1.xpose.msra.mxu0 0.0
      %130 = vmatprep.mubr.f32.mxu0 0.0
      %131 = vmatmul.mubr.f32.gmra.mrb[0].mxu0 %v61
      %v132 = vpop.f32.mrb[0].mxu0
      %v133 = vadd.f32 %v58, %v132
      %v134 = vpop.f32.mrb[0].mxu0
      %135 = vdwg.mxu0
      %p136 = scmp.lt.s32.totalorder %s46, 2
      %p137 = scmp.lt.s32.totalorder %s46, 1
      %s138 = scalar_select %p137, %s46, 1
      %s139 = sld [smem:[#allocation3 + %s138]]
      %s140 = scalar_select %p136, %s139, 0
      %v141 = vlaneseq
      %v142 = vand.u32 %v141, 127
      %v143 = vstv %s140
      %vm144 = vcmp.lt.s32.totalorder %v142, %v143
      %v145 = vmul.f32 %v133, 1.442695
      %v146 = vpow.pop %v145
      %v147 = vsel %vm144, %v146, 0.0
      %vm148 = vcmask 57344
      %v149 = vsel %vm148, %v147, 0.0
      %150 = vadd.xlane.f32.xlu0 %v149
      %v151 = vpop.xlane.xlu0 %150
      %v152 = vrot.slane %v151, 4
      %v153 = vadd.f32 %v151, %v152
      %v154 = vrot.slane %v153, 2
      %v155 = vadd.f32 %v153, %v154
      %v156 = vrot.slane %v155, 1
      %v157 = vadd.f32 %v155, %v156
      %s158 = vtos %v157
      %v159 = vstv %s158
      %s160 = scalar_lea.vmem %s4, %s41
      %vm161 = vcmask 0
      %162 = vst.msk [vmem:[%s160] sm:$0x1] %vm161, %v159
    $region22: #{tpu_custom_call.1} parent=1 // loop_footer
      %s45 = sadd.s32 1, %s41
    $region23: #{tpu_custom_call.1} parent=1 // loop_footer_branch
      %40 = sbr.rel target = $region19
    $region24: #{tpu_custom_call.1} parent=1 // loop_exit
      _
    // Predicated region
    $region25: #{tpu_custom_call.1} parent=1 // pred_check
      _
    $region26: #{tpu_custom_call.1} parent=1 // pred_check_branch
      %164 = sbr.rel (0) target = $region28
    $region27: #{tpu_custom_call.1} parent=1 // pred_region
      _
    $region28: #{tpu_custom_call.1} parent=1 // pred_fallthru
      _
    // Predicated region
    $region29: #{tpu_custom_call.1} parent=1 // pred_check
      _
    $region30: #{tpu_custom_call.1} parent=1 // pred_check_branch
      %166 = sbr.rel (0) target = $region32
    $region31: #{tpu_custom_call.1} parent=1 // pred_region
      _
    $region32: #{tpu_custom_call.1} parent=1 // pred_fallthru
      _
    %167 = vsyncpa [#allocation6], 1

</llo_original>
